<compile_context>
chip_gen: v7x
topology: tpu7x:2x2x1
jax: 0.10.0
libtpu: 0.0.40
codegen_flags: <defaults>
</compile_context>

<pallas_src>
import jax
import jax.numpy as jnp
from jax import lax
from jax.experimental import pallas as pl
from jax.experimental.pallas import tpu as pltpu


# ---- constants implied by the PyTorch module ------------------------------
class Embeddings:
    RESULT = 0
    LETTER = 1


class Tokens:
    EXACT = 3            # result vocab = EXACT + 1 = 4 (0 is padding)


class Dims:
    EMBEDDING_SIZE = 128  # lane-aligned embedding width


T_ROWS = 6                       # wordle guesses
H_COLS = 5                       # letters per guess
SEQ = T_ROWS * H_COLS            # 30
RESULT_VOCAB = Tokens.EXACT + 1  # 4
LETTER_VOCAB = 28
COL_VOCAB = 5
FUSED_VOCAB = RESULT_VOCAB * LETTER_VOCAB    # 112
TOTAL_VOCAB = FUSED_VOCAB + COL_VOCAB        # 117  (single K<=128 MXU pass)

MAX_BLOCK_ROWS = 1920     # 64 batch elems -> ~1 MB f32 output block
MIN_GRID_STEPS = 4        # >= 2 steps per TensorCore on v7x
SINGLE_BLOCK_ROWS = 240   # below this, fixed per-step overhead dominates


# ---- kernel ----------------------------------------------------------------
def preprocess_kernel(idx_ref, tab_ref, out_ref):
    # idx_ref: (tn, 2) int32; col 0 = fused (result,letter) index in [0, 112),
    #                         col 1 = 112 + column id h (precomputed in wrapper)
    # tab_ref: (117, E) float32 fused embedding table (same block every step)
    # out_ref: (tn, E) float32
    idx = idx_ref[...]                                              # (tn, 2)
    # Minimal-shape iota; the compares broadcast to (tn, 117).
    k_iota = lax.broadcasted_iota(jnp.int32, (1, TOTAL_VOCAB), 1)   # (1, 117)
    two_hot = ((k_iota == idx[:, 0:1]) | (k_iota == idx[:, 1:2])
               ).astype(jnp.float32)                                # (tn, 117)
    out_ref[...] = jnp.dot(two_hot, tab_ref[...],
                           preferred_element_type=jnp.float32
                           ).astype(out_ref.dtype)


# ---- tiling heuristic -------------------------------------------------------
def _choose_block_rows(n):
    """Rows per grid step: multiple of 8, ~<=1MB output block, >=4 steps when
    possible, exact division of n whenever achievable (no wasted writeback)."""
    if n <= SINGLE_BLOCK_ROWS:
        # One block equal to the full array (no (8,128) divisibility needed).
        return n
    tn0 = min(MAX_BLOCK_ROWS, pl.cdiv(n, MIN_GRID_STEPS))
    tn0 = max(8, (tn0 // 8) * 8)
    n_blocks = pl.cdiv(n, tn0)
    # Re-balance so the last block's overhang is minimal (often exactly 0).
    tn = ((pl.cdiv(n, n_blocks) + 7) // 8) * 8
    return tn


# ---- wrapper ----------------------------------------------------------------
def preprocess(state, result_table, letter_table, col_table):
    assert state.ndim == 4
    B, T, H, C = state.shape
    assert (T, H, C) == (T_ROWS, H_COLS, 2), state.shape
    E = result_table.shape[1]
    N = B * SEQ

    # Fused lookup table (tiny, built once per call on the XLA side):
    #   rows [0, 112): result_emb[r] + letter_emb[l]   at index r*28 + l
    #   rows [112, 117): col_emb[0..4]
    fused = (result_table[:, None, :] + letter_table[None, :, :]
             ).reshape(FUSED_VOCAB, E)
    table = jnp.concatenate([fused, col_table], axis=0).astype(jnp.float32)

    # Both two-hot indices precomputed here (per perf review): fused index and
    # column index (flat position p = b*30 + t*5 + h, so p % 5 == h).
    st = state.reshape(N, 2).astype(jnp.int32)
    fused_idx = (st[:, Embeddings.RESULT] * LETTER_VOCAB
                 + st[:, Embeddings.LETTER])
    col_idx = FUSED_VOCAB + (jnp.arange(N, dtype=jnp.int32) % COL_VOCAB)
    idx = jnp.stack([fused_idx, col_idx], axis=1)                  # (N, 2)
    # NOTE: like any one-hot formulation, out-of-range indices silently yield
    # a zero embedding instead of raising like torch.nn.Embedding.

    tn = _choose_block_rows(N)
    n_blocks = pl.cdiv(N, tn)
    # No pad-then-slice: Pallas masks the ragged last block's writes itself.

    cost = pl.CostEstimate(
        flops=2 * N * TOTAL_VOCAB * E,
        transcendentals=0,
        bytes_accessed=N * E * 4 + N * 2 * 4 + TOTAL_VOCAB * E * 4,
    )

    out = pl.pallas_call(
        preprocess_kernel,
        out_shape=jax.ShapeDtypeStruct((N, E), jnp.float32),
        grid_spec=pltpu.PrefetchScalarGridSpec(
            num_scalar_prefetch=0,
            grid=(n_blocks,),
            in_specs=[
                pl.BlockSpec((tn, 2), lambda i: (i, 0)),
                pl.BlockSpec((TOTAL_VOCAB, E), lambda i: (0, 0)),
            ],
            out_specs=pl.BlockSpec((tn, E), lambda i: (i, 0)),
        ),
        compiler_params=pltpu.CompilerParams(
            dimension_semantics=("parallel",)),
        cost_estimate=cost,
    )(idx, table)

    # TODO(synk): output stays float32 to match the f32 reference; emit bf16
    # here (halves the dominant HBM writeback on v5e/v6e) if consumers allow.
    return out.reshape(B, SEQ, E)


# ---- pure-JAX reference -----------------------------------------------------
def preprocess_ref(state, result_table, letter_table, col_table):
    B = state.shape[0]
    res = jnp.take(result_table, state[:, :, :, Embeddings.RESULT], axis=0)
    letter = jnp.take(letter_table, state[:, :, :, Embeddings.LETTER], axis=0)
    cols = jnp.tile(jnp.arange(5), (B, 6)).reshape(B, 6, 5)
    col_embs = jnp.take(col_table, cols, axis=0)
    x = res + letter + col_embs
    return x.reshape(B, SEQ, -1)


if __name__ == "__main__":
    E = Dims.EMBEDDING_SIZE
    key = jax.random.PRNGKey(0)
    k_rtab, k_ltab, k_ctab = jax.random.split(key, 3)

    # deterministic synthetic parameters (padding_idx=0 rows zeroed)
    result_table = 0.02 * jax.random.normal(k_rtab, (RESULT_VOCAB, E), jnp.float32)
    result_table = result_table.at[0].set(0.0)
    letter_table = 0.02 * jax.random.normal(k_ltab, (LETTER_VOCAB, E), jnp.float32)
    letter_table = letter_table.at[0].set(0.0)
    col_table = 0.02 * jax.random.normal(k_ctab, (COL_VOCAB, E), jnp.float32)
    # TODO(synk): row_emb / positional_emb are defined in __init__ but never
    # used in forward, so they are intentionally not materialized.

    # Exercise: exact 4-step grid (B=64), exact 5-step grid (B=40, previously
    # the wasteful pad-then-slice case), ragged last block (B=5), and a single
    # small block (B=2).
    for B in (64, 40, 5, 2):
        kb = jax.random.fold_in(key, B)
        kr, kl = jax.random.split(kb)
        result_ch = jax.random.randint(kr, (B, T_ROWS, H_COLS), 0, RESULT_VOCAB)
        letter_ch = jax.random.randint(kl, (B, T_ROWS, H_COLS), 0, LETTER_VOCAB)
        state = jnp.stack([result_ch, letter_ch], axis=-1).astype(jnp.int32)

        out = preprocess(state, result_table, letter_table, col_table)
        out = jax.block_until_ready(out)

        ref = preprocess_ref(state, result_table, letter_table, col_table)
        assert out.shape == (B, SEQ, E), (B, out.shape)
        assert jnp.allclose(out, ref, atol=1e-5, rtol=1e-5), f"mismatch at B={B}"

    print("KERNEL_OK")
</pallas_src>

<mosaic_0001>
module attributes {stable_mosaic.version = 11 : i64} {
  func.func @preprocess_kernel(%arg0: i32, %arg1: memref<480x2xi32, #tpu.memory_space<vmem>>, %arg2: memref<117x128xf32, #tpu.memory_space<vmem>>, %arg3: memref<480x128xf32, #tpu.memory_space<vmem>>) attributes {dimension_semantics = [#tpu.dimension_semantics<parallel>], iteration_bounds = array<i64: 4>, scalar_prefetch = 0 : i64, scratch_operands = 0 : i64, tpu.core_type = #tpu.core_type<tc>, window_params = [{transform_indices = @transform_0, window_bounds = array<i64: 480, 2>}, {pipeline_mode = #tpu.pipeline_mode<synchronous>, transform_indices = @transform_1, window_bounds = array<i64: 117, 128>}, {transform_indices = @transform_2, window_bounds = array<i64: 480, 128>}]} {
    %c0 = arith.constant 0 : index
    %c0_0 = arith.constant 0 : index
    %0 = vector.load %arg1[%c0, %c0_0] : memref<480x2xi32, #tpu.memory_space<vmem>>, vector<480x2xi32>
    %1 = tpu.iota {dimensions = array<i32: 1>} : vector<1x117xi32>
    %2 = vector.extract_strided_slice %0 {offsets = [0, 0], sizes = [480, 1], strides = [1, 1]} : vector<480x2xi32> to vector<480x1xi32>
    %3 = vector.broadcast %1 : vector<1x117xi32> to vector<480x117xi32>
    %4 = vector.broadcast %2 : vector<480x1xi32> to vector<480x117xi32>
    %5 = arith.cmpi eq, %3, %4 : vector<480x117xi32>
    %6 = vector.extract_strided_slice %0 {offsets = [0, 1], sizes = [480, 1], strides = [1, 1]} : vector<480x2xi32> to vector<480x1xi32>
    %7 = vector.broadcast %1 : vector<1x117xi32> to vector<480x117xi32>
    %8 = vector.broadcast %6 : vector<480x1xi32> to vector<480x117xi32>
    %9 = arith.cmpi eq, %7, %8 : vector<480x117xi32>
    %10 = arith.ori %5, %9 : vector<480x117xi1>
    %11 = arith.extui %10 : vector<480x117xi1> to vector<480x117xi32>
    %12 = arith.sitofp %11 : vector<480x117xi32> to vector<480x117xf32>
    %c0_1 = arith.constant 0 : index
    %c0_2 = arith.constant 0 : index
    %13 = vector.load %arg2[%c0_1, %c0_2] : memref<117x128xf32, #tpu.memory_space<vmem>>, vector<117x128xf32>
    %cst = arith.constant dense<0.000000e+00> : vector<480x128xf32>
    %14 = tpu.matmul %12, %13, %cst {dimension_numbers = #tpu.dot_dimension_numbers<[1], [0], [0], [1], [0, 0, 1, 1], [], []>} : vector<480x117xf32>, vector<117x128xf32>, vector<480x128xf32> -> vector<480x128xf32>
    %c0_3 = arith.constant 0 : index
    %c0_4 = arith.constant 0 : index
    %15 = vector.load %arg3[%c0_3, %c0_4] : memref<480x128xf32, #tpu.memory_space<vmem>>, vector<480x128xf32>
    tpu.vector_store %arg3[%c0_3, %c0_4], %14 {strides = array<i32>} : memref<480x128xf32, #tpu.memory_space<vmem>>, vector<480x128xf32>,
    return
  }
  func.func @transform_0(%arg0: i32) -> (i32, i32) {
    %c0_i32 = arith.constant 0 : i32
    %c0_i32_0 = arith.constant 0 : i32
    return %arg0, %c0_i32 : i32, i32
  }
  func.func @transform_1(%arg0: i32) -> (i32, i32) {
    %c0_i32 = arith.constant 0 : i32
    %c0_i32_0 = arith.constant 0 : i32
    %c0_i32_1 = arith.constant 0 : i32
    return %c0_i32, %c0_i32_0 : i32, i32
  }
  func.func @transform_2(%arg0: i32) -> (i32, i32) {
    %c0_i32 = arith.constant 0 : i32
    %c0_i32_0 = arith.constant 0 : i32
    return %arg0, %c0_i32 : i32, i32
  }
}

</mosaic_0001>

<llo_original>
// kernel: tpu_custom_call.1
$region0: #{tpu_custom_call.1}
  #allocation0 [shape = 'u32[]', space=smem, size = 0x4, offset = 0x4, fixed_abs, tag = 'smem constant byte address 0x4 - core index']
  #allocation1 [shape = 'u32[144,128]{1,0:T(1,128)}', space=vmem, size = 0x12000, scoped, tag = 'internal scratch']
  %s0 = inlined_call_operand.vmem [shape: s32[1920,2], index: 0, kind: input, shape index: {}]
  %s1 = inlined_call_operand.vmem [shape: f32[117,128], index: 1, kind: input, shape index: {}]
  %s2 = inlined_call_operand.hbm [shape: f32[1920,128], index: 2, kind: output, shape index: {}]
  %s3 = sld [smem:[#allocation0]]
  $region41: #{tpu_custom_call.1} parent=0
    _
  %s5 = ssub.s32 1, %s3
  %s6 = scalar_select 0, %s5, %s3
  $region1: #{tpu_custom_call.1} parent=0
    #allocation2 [shape = 'u8[491520]{0}', space=vmem, size = 0x78000, scoped, tag = 'output window, operand 0']
    #allocation3 [shape = 's32[2]{0}', space=sflag, size = 0x8, scoped, tag = 'scoped memory for tpu_custom_call.1']
    %7 = vsyncpa [#allocation3], 0
    %s8 = scalar_lea.sflag [#allocation3], 1
    %9 = vsyncpa %s8, 0
    loop: start=0, step=1, limit=6
    $region2: #{tpu_custom_call.1} parent=1 // loop_pre_header
      _
    $region3: #{tpu_custom_call.1} parent=1 // loop_header
      %s11 = sphi 0, %s15
      %p12 = scmp.ge.s32.totalorder %s11, 6
      %s21 = sphi 0, %s23
      %s24 = sphi 0, %s21
      %s25 = sphi 0, %s24
      %s41 = sphi 0, %s25
      %s45 = sphi 0, %s45
      %s47 = sphi 0, %s45
      %s48 = sphi 0, %s47
      %s62 = sphi 0, %s48
      %s68 = sphi 0, %s70
      %s71 = sphi 0, %s68
      %s72 = sphi 0, %s71
      %s88 = sphi 0, %s72
    $region4: #{tpu_custom_call.1} parent=1 // loop_header_branch
      %14 = sbr.rel (%p12) target = $region8
    $region5: #{tpu_custom_call.1} parent=1 // loop_body
      %s16 = ssub.s32 %s11, 1
      %s17 = ssub.s32 %s11, 2
      %s18 = sadd.s32 %s11, 1
      %s19 = ssub.s32 %s11, %s18
      %p20 = scmp.eq.s32.totalorder %s19, 0
      %s22 = sadd.s32 %s21, 1
      %s23 = scalar_select %p20, %s21, %s22
      %p26 = pneg %p20
      %p27 = scmp.eq.s32.totalorder %s11, 3
      %p28 = por %p26, %p27
      %p29 = scmp.ne.s32.totalorder %s21, %s24
      %p30 = scmp.eq.s32.totalorder %s11, 0
      %p31 = por %p29, %p30
      %p32 = scmp.ne.s32.totalorder %s21, %s24
      %p33 = scmp.eq.s32.totalorder %s16, 3
      %p34 = por %p32, %p33
      %p35 = scmp.ne.s32.totalorder %s24, %s25
      %p36 = scmp.eq.s32.totalorder %s16, 0
      %p37 = por %p35, %p36
      %p38 = scmp.ne.s32.totalorder %s24, %s25
      %p39 = scmp.eq.s32.totalorder %s17, 3
      %p40 = por %p38, %p39
      %p42 = scmp.ne.s32.totalorder %s25, %s41
      %p43 = scmp.eq.s32.totalorder %s17, 0
      %p44 = por %p42, %p43
      %s46 = sadd.s32 %s45, 1
      %p49 = scmp.eq.s32.totalorder %s11, 3
      %p50 = scmp.ne.s32.totalorder %s45, %s47
      %p51 = scmp.eq.s32.totalorder %s11, 0
      %p52 = por %p50, %p51
      %p53 = scmp.ne.s32.totalorder %s45, %s47
      %p54 = scmp.eq.s32.totalorder %s16, 3
      %p55 = por %p53, %p54
      %p56 = scmp.ne.s32.totalorder %s47, %s48
      %p57 = scmp.eq.s32.totalorder %s16, 0
      %p58 = por %p56, %p57
      %p59 = scmp.ne.s32.totalorder %s47, %s48
      %p60 = scmp.eq.s32.totalorder %s17, 3
      %p61 = por %p59, %p60
      %p63 = scmp.ne.s32.totalorder %s48, %s62
      %p64 = scmp.eq.s32.totalorder %s17, 0
      %p65 = por %p63, %p64
      %s66 = ssub.s32 %s11, %s18
      %p67 = scmp.eq.s32.totalorder %s66, 0
      %s69 = sadd.s32 %s68, 1
      %s70 = scalar_select %p67, %s68, %s69
      %p73 = pneg %p67
      %p74 = scmp.eq.s32.totalorder %s11, 3
      %p75 = por %p73, %p74
      %p76 = scmp.ne.s32.totalorder %s68, %s71
      %p77 = scmp.eq.s32.totalorder %s11, 0
      %p78 = por %p76, %p77
      %p79 = scmp.ne.s32.totalorder %s68, %s71
      %p80 = scmp.eq.s32.totalorder %s16, 3
      %p81 = por %p79, %p80
      %p82 = scmp.ne.s32.totalorder %s71, %s72
      %p83 = scmp.eq.s32.totalorder %s16, 0
      %p84 = por %p82, %p83
      %p85 = scmp.ne.s32.totalorder %s71, %s72
      %p86 = scmp.eq.s32.totalorder %s17, 3
      %p87 = por %p85, %p86
      %p89 = scmp.ne.s32.totalorder %s72, %s88
      %p90 = scmp.eq.s32.totalorder %s17, 0
      %p91 = por %p89, %p90
      %p92 = scmp.le.s32.totalorder 1, %s11
      %p93 = scmp.lt.s32.totalorder %s11, 5
      %p94 = pnand %p92, %p93
      %p95 = pneg %p94
      // Predicated region
      $region9: #{tpu_custom_call.1} parent=5 // pred_check
        _
      $region10: #{tpu_custom_call.1} parent=5 // pred_check_branch
        %97 = sbr.rel (%p94) target = $region12
      $region11: #{tpu_custom_call.1} parent=5 // pred_region
        %s98 = ssub.s32 %s11, 1
        // Predicated region
        $region13: #{tpu_custom_call.1} parent=11 // pred_check
          %p99 = pneg %p58
        $region14: #{tpu_custom_call.1} parent=11 // pred_check_branch
          %101 = sbr.rel (%p99) target = $region16
        $region15: #{tpu_custom_call.1} parent=11 // pred_region
          _
        $region16: #{tpu_custom_call.1} parent=11 // pred_fallthru
          _
      $region12: #{tpu_custom_call.1} parent=5 // pred_fallthru
        _
      %p102 = scmp.lt.s32.totalorder %s11, 4
      // Predicated region
      $region17: #{tpu_custom_call.1} parent=5 // pred_check
        %p103 = pneg %p102
      $region18: #{tpu_custom_call.1} parent=5 // pred_check_branch
        %105 = sbr.rel (%p103) target = $region20
      $region19: #{tpu_custom_call.1} parent=5 // pred_region
        // Predicated region
        $region21: #{tpu_custom_call.1} parent=19 // pred_check
          %p106 = pneg %p31
        $region22: #{tpu_custom_call.1} parent=19 // pred_check_branch
          %108 = sbr.rel (%p106) target = $region24
        $region23: #{tpu_custom_call.1} parent=19 // pred_region
          %s109 = smul.u32 60, %s11
          %p110 = scmp.lt.s32.totalorder %s109, 239
          %s111 = scalar_select %p110, %s109, 239
          %s112 = smul.addr %s111, 8
          %s113 = scalar_lea.vmem %s0, %s112
          %s114 = smul.u32 60, %s11
        $region24: #{tpu_custom_call.1} parent=19 // pred_fallthru
          _
      $region20: #{tpu_custom_call.1} parent=5 // pred_fallthru
        _
      %p115 = scmp.le.s32.totalorder 1, %s11
      %p116 = scmp.lt.s32.totalorder %s11, 5
      %p117 = pnand %p115, %p116
      %p118 = pneg %p117
      // Predicated region
      $region25: #{tpu_custom_call.1} parent=5 // pred_check
        _
      $region26: #{tpu_custom_call.1} parent=5 // pred_check_branch
        %120 = sbr.rel (%p117) target = $region28
      $region27: #{tpu_custom_call.1} parent=5 // pred_region
        %s121 = ssub.s32 %s11, 1
        %s122 = smul.u32 60, %s16
        %p123 = scmp.lt.s32.totalorder %s122, 239
        %s124 = scalar_select %p123, %s122, 239
        %s125 = smul.addr %s124, 8
        %s126 = scalar_lea.vmem %s0, %s125
        %p127 = pneg %p37
        %p128 = pneg %p34
        %p129 = pneg %p58
        %p130 = pneg %p55
        %p131 = pneg %p84
        %p132 = pneg %p81
        %s133 = sand.u32 %s71, 1
        %s134 = scalar_lea.sflag [#allocation3], %s133
        %s135 = sand.u32 %s71, 1
        %s136 = smul.addr %s135, 480
        %s137 = scalar_lea.vmem [#allocation2], %s136
        %s138 = smul.u32 60, %s16
        %p139 = scmp.lt.s32.totalorder %s138, 239
        %s140 = scalar_select %p139, %s138, 239
        %s141 = smul.addr %s140, 8
        %s142 = scalar_lea.vmem %s0, %s141
        %s143 = smul.u32 60, %s16
        %s144 = smul.u32 60, %s16
        %v145 = vld [vmem:[%s142] sm:$0xff]
        %v146 = vld [vmem:[%s142 + $0x8] sm:$0xff]
        %v147 = vld [vmem:[%s142 + $0x10] sm:$0xff]
        %v148 = vld [vmem:[%s142 + $0x18] sm:$0xff]
        %v149 = vld [vmem:[%s142 + $0x20] sm:$0xff]
        %v150 = vld [vmem:[%s142 + $0x28] sm:$0xff]
        %v151 = vld [vmem:[%s142 + $0x30] sm:$0xff]
        %v152 = vld [vmem:[%s142 + $0x38] sm:$0xff]
        %v153 = vld [vmem:[%s142 + $0x40] sm:$0xff]
        %v154 = vld [vmem:[%s142 + $0x48] sm:$0xff]
        %v155 = vld [vmem:[%s142 + $0x50] sm:$0xff]
        %v156 = vld [vmem:[%s142 + $0x58] sm:$0xff]
        %v157 = vld [vmem:[%s142 + $0x60] sm:$0xff]
        %v158 = vld [vmem:[%s142 + $0x68] sm:$0xff]
        %v159 = vld [vmem:[%s142 + $0x70] sm:$0xff]
        %v160 = vld [vmem:[%s142 + $0x78] sm:$0xff]
        %v161 = vld [vmem:[%s142 + $0x80] sm:$0xff]
        %v162 = vld [vmem:[%s142 + $0x88] sm:$0xff]
        %v163 = vld [vmem:[%s142 + $0x90] sm:$0xff]
        %v164 = vld [vmem:[%s142 + $0x98] sm:$0xff]
        %v165 = vld [vmem:[%s142 + $0xa0] sm:$0xff]
        %v166 = vld [vmem:[%s142 + $0xa8] sm:$0xff]
        %v167 = vld [vmem:[%s142 + $0xb0] sm:$0xff]
        %v168 = vld [vmem:[%s142 + $0xb8] sm:$0xff]
        %v169 = vld [vmem:[%s142 + $0xc0] sm:$0xff]
        %v170 = vld [vmem:[%s142 + $0xc8] sm:$0xff]
        %v171 = vld [vmem:[%s142 + $0xd0] sm:$0xff]
        %v172 = vld [vmem:[%s142 + $0xd8] sm:$0xff]
        %v173 = vld [vmem:[%s142 + $0xe0] sm:$0xff]
        %v174 = vld [vmem:[%s142 + $0xe8] sm:$0xff]
        %v175 = vld [vmem:[%s142 + $0xf0] sm:$0xff]
        %v176 = vld [vmem:[%s142 + $0xf8] sm:$0xff]
        %v177 = vld [vmem:[%s142 + $0x100] sm:$0xff]
        %v178 = vld [vmem:[%s142 + $0x108] sm:$0xff]
        %v179 = vld [vmem:[%s142 + $0x110] sm:$0xff]
        %v180 = vld [vmem:[%s142 + $0x118] sm:$0xff]
        %v181 = vld [vmem:[%s142 + $0x120] sm:$0xff]
        %v182 = vld [vmem:[%s142 + $0x128] sm:$0xff]
        %v183 = vld [vmem:[%s142 + $0x130] sm:$0xff]
        %v184 = vld [vmem:[%s142 + $0x138] sm:$0xff]
        %v185 = vld [vmem:[%s142 + $0x140] sm:$0xff]
        %v186 = vld [vmem:[%s142 + $0x148] sm:$0xff]
        %v187 = vld [vmem:[%s142 + $0x150] sm:$0xff]
        %v188 = vld [vmem:[%s142 + $0x158] sm:$0xff]
        %v189 = vld [vmem:[%s142 + $0x160] sm:$0xff]
        %v190 = vld [vmem:[%s142 + $0x168] sm:$0xff]
        %v191 = vld [vmem:[%s142 + $0x170] sm:$0xff]
        %v192 = vld [vmem:[%s142 + $0x178] sm:$0xff]
        %v193 = vld [vmem:[%s142 + $0x180] sm:$0xff]
        %v194 = vld [vmem:[%s142 + $0x188] sm:$0xff]
        %v195 = vld [vmem:[%s142 + $0x190] sm:$0xff]
        %v196 = vld [vmem:[%s142 + $0x198] sm:$0xff]
        %v197 = vld [vmem:[%s142 + $0x1a0] sm:$0xff]
        %v198 = vld [vmem:[%s142 + $0x1a8] sm:$0xff]
        %v199 = vld [vmem:[%s142 + $0x1b0] sm:$0xff]
        %v200 = vld [vmem:[%s142 + $0x1b8] sm:$0xff]
        %v201 = vld [vmem:[%s142 + $0x1c0] sm:$0xff]
        %v202 = vld [vmem:[%s142 + $0x1c8] sm:$0xff]
        %v203 = vld [vmem:[%s142 + $0x1d0] sm:$0xff]
        %v204 = vld [vmem:[%s142 + $0x1d8] sm:$0xff]
        %v205 = vlaneseq
        %v206 = vand.u32 %v205, 127
        %207 = vset.pattern.permute.xlu0 0
        %208 = vperm.xlu0 %207, %v145
        %v209 = vpop.permute.xlu0 %208
        %210 = vset.pattern.permute.xlu0 0
        %211 = vperm.xlu0 %210, %v146
        %v212 = vpop.permute.xlu0 %211
        %213 = vset.pattern.permute.xlu0 0
        %214 = vperm.xlu0 %213, %v147
        %v215 = vpop.permute.xlu0 %214
        %216 = vset.pattern.permute.xlu0 0
        %217 = vperm.xlu0 %216, %v148
        %v218 = vpop.permute.xlu0 %217
        %219 = vset.pattern.permute.xlu0 0
        %220 = vperm.xlu0 %219, %v149
        %v221 = vpop.permute.xlu0 %220
        %222 = vset.pattern.permute.xlu0 0
        %223 = vperm.xlu0 %222, %v150
        %v224 = vpop.permute.xlu0 %223
        %225 = vset.pattern.permute.xlu0 0
        %226 = vperm.xlu0 %225, %v151
        %v227 = vpop.permute.xlu0 %226
        %228 = vset.pattern.permute.xlu0 0
        %229 = vperm.xlu0 %228, %v152
        %v230 = vpop.permute.xlu0 %229
        %231 = vset.pattern.permute.xlu0 0
        %232 = vperm.xlu0 %231, %v153
        %v233 = vpop.permute.xlu0 %232
        %234 = vset.pattern.permute.xlu0 0
        %235 = vperm.xlu0 %234, %v154
        %v236 = vpop.permute.xlu0 %235
        %237 = vset.pattern.permute.xlu0 0
        %238 = vperm.xlu0 %237, %v155
        %v239 = vpop.permute.xlu0 %238
        %240 = vset.pattern.permute.xlu0 0
        %241 = vperm.xlu0 %240, %v156
        %v242 = vpop.permute.xlu0 %241
        %243 = vset.pattern.permute.xlu0 0
        %244 = vperm.xlu0 %243, %v157
        %v245 = vpop.permute.xlu0 %244
        %246 = vset.pattern.permute.xlu0 0
        %247 = vperm.xlu0 %246, %v158
        %v248 = vpop.permute.xlu0 %247
        %249 = vset.pattern.permute.xlu0 0
        %250 = vperm.xlu0 %249, %v159
        %v251 = vpop.permute.xlu0 %250
        %252 = vset.pattern.permute.xlu0 0
        %253 = vperm.xlu0 %252, %v160
        %v254 = vpop.permute.xlu0 %253
        %255 = vset.pattern.permute.xlu0 0
        %256 = vperm.xlu0 %255, %v161
        %v257 = vpop.permute.xlu0 %256
        %258 = vset.pattern.permute.xlu0 0
        %259 = vperm.xlu0 %258, %v162
        %v260 = vpop.permute.xlu0 %259
        %261 = vset.pattern.permute.xlu0 0
        %262 = vperm.xlu0 %261, %v163
        %v263 = vpop.permute.xlu0 %262
        %264 = vset.pattern.permute.xlu0 0
        %265 = vperm.xlu0 %264, %v164
        %v266 = vpop.permute.xlu0 %265
        %267 = vset.pattern.permute.xlu0 0
        %268 = vperm.xlu0 %267, %v165
        %v269 = vpop.permute.xlu0 %268
        %270 = vset.pattern.permute.xlu0 0
        %271 = vperm.xlu0 %270, %v166
        %v272 = vpop.permute.xlu0 %271
        %273 = vset.pattern.permute.xlu0 0
        %274 = vperm.xlu0 %273, %v167
        %v275 = vpop.permute.xlu0 %274
        %276 = vset.pattern.permute.xlu0 0
        %277 = vperm.xlu0 %276, %v168
        %v278 = vpop.permute.xlu0 %277
        %279 = vset.pattern.permute.xlu0 0
        %280 = vperm.xlu0 %279, %v169
        %v281 = vpop.permute.xlu0 %280
        %282 = vset.pattern.permute.xlu0 0
        %283 = vperm.xlu0 %282, %v170
        %v284 = vpop.permute.xlu0 %283
        %285 = vset.pattern.permute.xlu0 0
        %286 = vperm.xlu0 %285, %v171
        %v287 = vpop.permute.xlu0 %286
        %288 = vset.pattern.permute.xlu0 0
        %289 = vperm.xlu0 %288, %v172
        %v290 = vpop.permute.xlu0 %289
        %291 = vset.pattern.permute.xlu0 0
        %292 = vperm.xlu0 %291, %v173
        %v293 = vpop.permute.xlu0 %292
        %294 = vset.pattern.permute.xlu0 0
        %295 = vperm.xlu0 %294, %v174
        %v296 = vpop.permute.xlu0 %295
        %297 = vset.pattern.permute.xlu0 0
        %298 = vperm.xlu0 %297, %v175
        %v299 = vpop.permute.xlu0 %298
        %300 = vset.pattern.permute.xlu0 0
        %301 = vperm.xlu0 %300, %v176
        %v302 = vpop.permute.xlu0 %301
        %303 = vset.pattern.permute.xlu0 0
        %304 = vperm.xlu0 %303, %v177
        %v305 = vpop.permute.xlu0 %304
        %306 = vset.pattern.permute.xlu0 0
        %307 = vperm.xlu0 %306, %v178
        %v308 = vpop.permute.xlu0 %307
        %309 = vset.pattern.permute.xlu0 0
        %310 = vperm.xlu0 %309, %v179
        %v311 = vpop.permute.xlu0 %310
        %312 = vset.pattern.permute.xlu0 0
        %313 = vperm.xlu0 %312, %v180
        %v314 = vpop.permute.xlu0 %313
        %315 = vset.pattern.permute.xlu0 0
        %316 = vperm.xlu0 %315, %v181
        %v317 = vpop.permute.xlu0 %316
        %318 = vset.pattern.permute.xlu0 0
        %319 = vperm.xlu0 %318, %v182
        %v320 = vpop.permute.xlu0 %319
        %321 = vset.pattern.permute.xlu0 0
        %322 = vperm.xlu0 %321, %v183
        %v323 = vpop.permute.xlu0 %322
        %324 = vset.pattern.permute.xlu0 0
        %325 = vperm.xlu0 %324, %v184
        %v326 = vpop.permute.xlu0 %325
        %327 = vset.pattern.permute.xlu0 0
        %328 = vperm.xlu0 %327, %v185
        %v329 = vpop.permute.xlu0 %328
        %330 = vset.pattern.permute.xlu0 0
        %331 = vperm.xlu0 %330, %v186
        %v332 = vpop.permute.xlu0 %331
        %333 = vset.pattern.permute.xlu0 0
        %334 = vperm.xlu0 %333, %v187
        %v335 = vpop.permute.xlu0 %334
        %336 = vset.pattern.permute.xlu0 0
        %337 = vperm.xlu0 %336, %v188
        %v338 = vpop.permute.xlu0 %337
        %339 = vset.pattern.permute.xlu0 0
        %340 = vperm.xlu0 %339, %v189
        %v341 = vpop.permute.xlu0 %340
        %342 = vset.pattern.permute.xlu0 0
        %343 = vperm.xlu0 %342, %v190
        %v344 = vpop.permute.xlu0 %343
        %345 = vset.pattern.permute.xlu0 0
        %346 = vperm.xlu0 %345, %v191
        %v347 = vpop.permute.xlu0 %346
        %348 = vset.pattern.permute.xlu0 0
        %349 = vperm.xlu0 %348, %v192
        %v350 = vpop.permute.xlu0 %349
        %351 = vset.pattern.permute.xlu0 0
        %352 = vperm.xlu0 %351, %v193
        %v353 = vpop.permute.xlu0 %352
        %354 = vset.pattern.permute.xlu0 0
        %355 = vperm.xlu0 %354, %v194
        %v356 = vpop.permute.xlu0 %355
        %357 = vset.pattern.permute.xlu0 0
        %358 = vperm.xlu0 %357, %v195
        %v359 = vpop.permute.xlu0 %358
        %360 = vset.pattern.permute.xlu0 0
        %361 = vperm.xlu0 %360, %v196
        %v362 = vpop.permute.xlu0 %361
        %363 = vset.pattern.permute.xlu0 0
        %364 = vperm.xlu0 %363, %v197
        %v365 = vpop.permute.xlu0 %364
        %366 = vset.pattern.permute.xlu0 0
        %367 = vperm.xlu0 %366, %v198
        %v368 = vpop.permute.xlu0 %367
        %369 = vset.pattern.permute.xlu0 0
        %370 = vperm.xlu0 %369, %v199
        %v371 = vpop.permute.xlu0 %370
        %372 = vset.pattern.permute.xlu0 0
        %373 = vperm.xlu0 %372, %v200
        %v374 = vpop.permute.xlu0 %373
        %375 = vset.pattern.permute.xlu0 0
        %376 = vperm.xlu0 %375, %v201
        %v377 = vpop.permute.xlu0 %376
        %378 = vset.pattern.permute.xlu0 0
        %379 = vperm.xlu0 %378, %v202
        %v380 = vpop.permute.xlu0 %379
        %381 = vset.pattern.permute.xlu0 0
        %382 = vperm.xlu0 %381, %v203
        %v383 = vpop.permute.xlu0 %382
        %384 = vset.pattern.permute.xlu0 0
        %385 = vperm.xlu0 %384, %v204
        %v386 = vpop.permute.xlu0 %385
        %vm387 = vcmp.eq.s32.totalorder %v206, %v209
        %vm388 = vcmp.eq.s32.totalorder %v206, %v212
        %vm389 = vcmp.eq.s32.totalorder %v206, %v215
        %vm390 = vcmp.eq.s32.totalorder %v206, %v218
        %vm391 = vcmp.eq.s32.totalorder %v206, %v221
        %vm392 = vcmp.eq.s32.totalorder %v206, %v224
        %vm393 = vcmp.eq.s32.totalorder %v206, %v227
        %vm394 = vcmp.eq.s32.totalorder %v206, %v230
        %vm395 = vcmp.eq.s32.totalorder %v206, %v233
        %vm396 = vcmp.eq.s32.totalorder %v206, %v236
        %vm397 = vcmp.eq.s32.totalorder %v206, %v239
        %vm398 = vcmp.eq.s32.totalorder %v206, %v242
        %vm399 = vcmp.eq.s32.totalorder %v206, %v245
        %vm400 = vcmp.eq.s32.totalorder %v206, %v248
        %vm401 = vcmp.eq.s32.totalorder %v206, %v251
        %vm402 = vcmp.eq.s32.totalorder %v206, %v254
        %vm403 = vcmp.eq.s32.totalorder %v206, %v257
        %vm404 = vcmp.eq.s32.totalorder %v206, %v260
        %vm405 = vcmp.eq.s32.totalorder %v206, %v263
        %vm406 = vcmp.eq.s32.totalorder %v206, %v266
        %vm407 = vcmp.eq.s32.totalorder %v206, %v269
        %vm408 = vcmp.eq.s32.totalorder %v206, %v272
        %vm409 = vcmp.eq.s32.totalorder %v206, %v275
        %vm410 = vcmp.eq.s32.totalorder %v206, %v278
        %vm411 = vcmp.eq.s32.totalorder %v206, %v281
        %vm412 = vcmp.eq.s32.totalorder %v206, %v284
        %vm413 = vcmp.eq.s32.totalorder %v206, %v287
        %vm414 = vcmp.eq.s32.totalorder %v206, %v290
        %vm415 = vcmp.eq.s32.totalorder %v206, %v293
        %vm416 = vcmp.eq.s32.totalorder %v206, %v296
        %vm417 = vcmp.eq.s32.totalorder %v206, %v299
        %vm418 = vcmp.eq.s32.totalorder %v206, %v302
        %vm419 = vcmp.eq.s32.totalorder %v206, %v305
        %vm420 = vcmp.eq.s32.totalorder %v206, %v308
        %vm421 = vcmp.eq.s32.totalorder %v206, %v311
        %vm422 = vcmp.eq.s32.totalorder %v206, %v314
        %vm423 = vcmp.eq.s32.totalorder %v206, %v317
        %vm424 = vcmp.eq.s32.totalorder %v206, %v320
        %vm425 = vcmp.eq.s32.totalorder %v206, %v323
        %vm426 = vcmp.eq.s32.totalorder %v206, %v326
        %vm427 = vcmp.eq.s32.totalorder %v206, %v329
        %vm428 = vcmp.eq.s32.totalorder %v206, %v332
        %vm429 = vcmp.eq.s32.totalorder %v206, %v335
        %vm430 = vcmp.eq.s32.totalorder %v206, %v338
        %vm431 = vcmp.eq.s32.totalorder %v206, %v341
        %vm432 = vcmp.eq.s32.totalorder %v206, %v344
        %vm433 = vcmp.eq.s32.totalorder %v206, %v347
        %vm434 = vcmp.eq.s32.totalorder %v206, %v350
        %vm435 = vcmp.eq.s32.totalorder %v206, %v353
        %vm436 = vcmp.eq.s32.totalorder %v206, %v356
        %vm437 = vcmp.eq.s32.totalorder %v206, %v359
        %vm438 = vcmp.eq.s32.totalorder %v206, %v362
        %vm439 = vcmp.eq.s32.totalorder %v206, %v365
        %vm440 = vcmp.eq.s32.totalorder %v206, %v368
        %vm441 = vcmp.eq.s32.totalorder %v206, %v371
        %vm442 = vcmp.eq.s32.totalorder %v206, %v374
        %vm443 = vcmp.eq.s32.totalorder %v206, %v377
        %vm444 = vcmp.eq.s32.totalorder %v206, %v380
        %vm445 = vcmp.eq.s32.totalorder %v206, %v383
        %vm446 = vcmp.eq.s32.totalorder %v206, %v386
        %447 = vset.pattern.permute.xlu0 1
        %448 = vperm.xlu0 %447, %v145
        %v449 = vpop.permute.xlu0 %448
        %450 = vset.pattern.permute.xlu0 1
        %451 = vperm.xlu0 %450, %v146
        %v452 = vpop.permute.xlu0 %451
        %453 = vset.pattern.permute.xlu0 1
        %454 = vperm.xlu0 %453, %v147
        %v455 = vpop.permute.xlu0 %454
        %456 = vset.pattern.permute.xlu0 1
        %457 = vperm.xlu0 %456, %v148
        %v458 = vpop.permute.xlu0 %457
        %459 = vset.pattern.permute.xlu0 1
        %460 = vperm.xlu0 %459, %v149
        %v461 = vpop.permute.xlu0 %460
        %462 = vset.pattern.permute.xlu0 1
        %463 = vperm.xlu0 %462, %v150
        %v464 = vpop.permute.xlu0 %463
        %465 = vset.pattern.permute.xlu0 1
        %466 = vperm.xlu0 %465, %v151
        %v467 = vpop.permute.xlu0 %466
        %468 = vset.pattern.permute.xlu0 1
        %469 = vperm.xlu0 %468, %v152
        %v470 = vpop.permute.xlu0 %469
        %471 = vset.pattern.permute.xlu0 1
        %472 = vperm.xlu0 %471, %v153
        %v473 = vpop.permute.xlu0 %472
        %474 = vset.pattern.permute.xlu0 1
        %475 = vperm.xlu0 %474, %v154
        %v476 = vpop.permute.xlu0 %475
        %477 = vset.pattern.permute.xlu0 1
        %478 = vperm.xlu0 %477, %v155
        %v479 = vpop.permute.xlu0 %478
        %480 = vset.pattern.permute.xlu0 1
        %481 = vperm.xlu0 %480, %v156
        %v482 = vpop.permute.xlu0 %481
        %483 = vset.pattern.permute.xlu0 1
        %484 = vperm.xlu0 %483, %v157
        %v485 = vpop.permute.xlu0 %484
        %486 = vset.pattern.permute.xlu0 1
        %487 = vperm.xlu0 %486, %v158
        %v488 = vpop.permute.xlu0 %487
        %489 = vset.pattern.permute.xlu0 1
        %490 = vperm.xlu0 %489, %v159
        %v491 = vpop.permute.xlu0 %490
        %492 = vset.pattern.permute.xlu0 1
        %493 = vperm.xlu0 %492, %v160
        %v494 = vpop.permute.xlu0 %493
        %495 = vset.pattern.permute.xlu0 1
        %496 = vperm.xlu0 %495, %v161
        %v497 = vpop.permute.xlu0 %496
        %498 = vset.pattern.permute.xlu0 1
        %499 = vperm.xlu0 %498, %v162
        %v500 = vpop.permute.xlu0 %499
        %501 = vset.pattern.permute.xlu0 1
        %502 = vperm.xlu0 %501, %v163
        %v503 = vpop.permute.xlu0 %502
        %504 = vset.pattern.permute.xlu0 1
        %505 = vperm.xlu0 %504, %v164
        %v506 = vpop.permute.xlu0 %505
        %507 = vset.pattern.permute.xlu0 1
        %508 = vperm.xlu0 %507, %v165
        %v509 = vpop.permute.xlu0 %508
        %510 = vset.pattern.permute.xlu0 1
        %511 = vperm.xlu0 %510, %v166
        %v512 = vpop.permute.xlu0 %511
        %513 = vset.pattern.permute.xlu0 1
        %514 = vperm.xlu0 %513, %v167
        %v515 = vpop.permute.xlu0 %514
        %516 = vset.pattern.permute.xlu0 1
        %517 = vperm.xlu0 %516, %v168
        %v518 = vpop.permute.xlu0 %517
        %519 = vset.pattern.permute.xlu0 1
        %520 = vperm.xlu0 %519, %v169
        %v521 = vpop.permute.xlu0 %520
        %522 = vset.pattern.permute.xlu0 1
        %523 = vperm.xlu0 %522, %v170
        %v524 = vpop.permute.xlu0 %523
        %525 = vset.pattern.permute.xlu0 1
        %526 = vperm.xlu0 %525, %v171
        %v527 = vpop.permute.xlu0 %526
        %528 = vset.pattern.permute.xlu0 1
        %529 = vperm.xlu0 %528, %v172
        %v530 = vpop.permute.xlu0 %529
        %531 = vset.pattern.permute.xlu0 1
        %532 = vperm.xlu0 %531, %v173
        %v533 = vpop.permute.xlu0 %532
        %534 = vset.pattern.permute.xlu0 1
        %535 = vperm.xlu0 %534, %v174
        %v536 = vpop.permute.xlu0 %535
        %537 = vset.pattern.permute.xlu0 1
        %538 = vperm.xlu0 %537, %v175
        %v539 = vpop.permute.xlu0 %538
        %540 = vset.pattern.permute.xlu0 1
        %541 = vperm.xlu0 %540, %v176
        %v542 = vpop.permute.xlu0 %541
        %543 = vset.pattern.permute.xlu0 1
        %544 = vperm.xlu0 %543, %v177
        %v545 = vpop.permute.xlu0 %544
        %546 = vset.pattern.permute.xlu0 1
        %547 = vperm.xlu0 %546, %v178
        %v548 = vpop.permute.xlu0 %547
        %549 = vset.pattern.permute.xlu0 1
        %550 = vperm.xlu0 %549, %v179
        %v551 = vpop.permute.xlu0 %550
        %552 = vset.pattern.permute.xlu0 1
        %553 = vperm.xlu0 %552, %v180
        %v554 = vpop.permute.xlu0 %553
        %555 = vset.pattern.permute.xlu0 1
        %556 = vperm.xlu0 %555, %v181
        %v557 = vpop.permute.xlu0 %556
        %558 = vset.pattern.permute.xlu0 1
        %559 = vperm.xlu0 %558, %v182
        %v560 = vpop.permute.xlu0 %559
        %561 = vset.pattern.permute.xlu0 1
        %562 = vperm.xlu0 %561, %v183
        %v563 = vpop.permute.xlu0 %562
        %564 = vset.pattern.permute.xlu0 1
        %565 = vperm.xlu0 %564, %v184
        %v566 = vpop.permute.xlu0 %565
        %567 = vset.pattern.permute.xlu0 1
        %568 = vperm.xlu0 %567, %v185
        %v569 = vpop.permute.xlu0 %568
        %570 = vset.pattern.permute.xlu0 1
        %571 = vperm.xlu0 %570, %v186
        %v572 = vpop.permute.xlu0 %571
        %573 = vset.pattern.permute.xlu0 1
        %574 = vperm.xlu0 %573, %v187
        %v575 = vpop.permute.xlu0 %574
        %576 = vset.pattern.permute.xlu0 1
        %577 = vperm.xlu0 %576, %v188
        %v578 = vpop.permute.xlu0 %577
        %579 = vset.pattern.permute.xlu0 1
        %580 = vperm.xlu0 %579, %v189
        %v581 = vpop.permute.xlu0 %580
        %582 = vset.pattern.permute.xlu0 1
        %583 = vperm.xlu0 %582, %v190
        %v584 = vpop.permute.xlu0 %583
        %585 = vset.pattern.permute.xlu0 1
        %586 = vperm.xlu0 %585, %v191
        %v587 = vpop.permute.xlu0 %586
        %588 = vset.pattern.permute.xlu0 1
        %589 = vperm.xlu0 %588, %v192
        %v590 = vpop.permute.xlu0 %589
        %591 = vset.pattern.permute.xlu0 1
        %592 = vperm.xlu0 %591, %v193
        %v593 = vpop.permute.xlu0 %592
        %594 = vset.pattern.permute.xlu0 1
        %595 = vperm.xlu0 %594, %v194
        %v596 = vpop.permute.xlu0 %595
        %597 = vset.pattern.permute.xlu0 1
        %598 = vperm.xlu0 %597, %v195
        %v599 = vpop.permute.xlu0 %598
        %600 = vset.pattern.permute.xlu0 1
        %601 = vperm.xlu0 %600, %v196
        %v602 = vpop.permute.xlu0 %601
        %603 = vset.pattern.permute.xlu0 1
        %604 = vperm.xlu0 %603, %v197
        %v605 = vpop.permute.xlu0 %604
        %606 = vset.pattern.permute.xlu0 1
        %607 = vperm.xlu0 %606, %v198
        %v608 = vpop.permute.xlu0 %607
        %609 = vset.pattern.permute.xlu0 1
        %610 = vperm.xlu0 %609, %v199
        %v611 = vpop.permute.xlu0 %610
        %612 = vset.pattern.permute.xlu0 1
        %613 = vperm.xlu0 %612, %v200
        %v614 = vpop.permute.xlu0 %613
        %615 = vset.pattern.permute.xlu0 1
        %616 = vperm.xlu0 %615, %v201
        %v617 = vpop.permute.xlu0 %616
        %618 = vset.pattern.permute.xlu0 1
        %619 = vperm.xlu0 %618, %v202
        %v620 = vpop.permute.xlu0 %619
        %621 = vset.pattern.permute.xlu0 1
        %622 = vperm.xlu0 %621, %v203
        %v623 = vpop.permute.xlu0 %622
        %624 = vset.pattern.permute.xlu0 1
        %625 = vperm.xlu0 %624, %v204
        %v626 = vpop.permute.xlu0 %625
        %vm627 = vcmp.eq.s32.totalorder %v206, %v449
        %vm628 = vcmp.eq.s32.totalorder %v206, %v452
        %vm629 = vcmp.eq.s32.totalorder %v206, %v455
        %vm630 = vcmp.eq.s32.totalorder %v206, %v458
        %vm631 = vcmp.eq.s32.totalorder %v206, %v461
        %vm632 = vcmp.eq.s32.totalorder %v206, %v464
        %vm633 = vcmp.eq.s32.totalorder %v206, %v467
        %vm634 = vcmp.eq.s32.totalorder %v206, %v470
        %vm635 = vcmp.eq.s32.totalorder %v206, %v473
        %vm636 = vcmp.eq.s32.totalorder %v206, %v476
        %vm637 = vcmp.eq.s32.totalorder %v206, %v479
        %vm638 = vcmp.eq.s32.totalorder %v206, %v482
        %vm639 = vcmp.eq.s32.totalorder %v206, %v485
        %vm640 = vcmp.eq.s32.totalorder %v206, %v488
        %vm641 = vcmp.eq.s32.totalorder %v206, %v491
        %vm642 = vcmp.eq.s32.totalorder %v206, %v494
        %vm643 = vcmp.eq.s32.totalorder %v206, %v497
        %vm644 = vcmp.eq.s32.totalorder %v206, %v500
        %vm645 = vcmp.eq.s32.totalorder %v206, %v503
        %vm646 = vcmp.eq.s32.totalorder %v206, %v506
        %vm647 = vcmp.eq.s32.totalorder %v206, %v509
        %vm648 = vcmp.eq.s32.totalorder %v206, %v512
        %vm649 = vcmp.eq.s32.totalorder %v206, %v515
        %vm650 = vcmp.eq.s32.totalorder %v206, %v518
        %vm651 = vcmp.eq.s32.totalorder %v206, %v521
        %vm652 = vcmp.eq.s32.totalorder %v206, %v524
        %vm653 = vcmp.eq.s32.totalorder %v206, %v527
        %vm654 = vcmp.eq.s32.totalorder %v206, %v530
        %vm655 = vcmp.eq.s32.totalorder %v206, %v533
        %vm656 = vcmp.eq.s32.totalorder %v206, %v536
        %vm657 = vcmp.eq.s32.totalorder %v206, %v539
        %vm658 = vcmp.eq.s32.totalorder %v206, %v542
        %vm659 = vcmp.eq.s32.totalorder %v206, %v545
        %vm660 = vcmp.eq.s32.totalorder %v206, %v548
        %vm661 = vcmp.eq.s32.totalorder %v206, %v551
        %vm662 = vcmp.eq.s32.totalorder %v206, %v554
        %vm663 = vcmp.eq.s32.totalorder %v206, %v557
        %vm664 = vcmp.eq.s32.totalorder %v206, %v560
        %vm665 = vcmp.eq.s32.totalorder %v206, %v563
        %vm666 = vcmp.eq.s32.totalorder %v206, %v566
        %vm667 = vcmp.eq.s32.totalorder %v206, %v569
        %vm668 = vcmp.eq.s32.totalorder %v206, %v572
        %vm669 = vcmp.eq.s32.totalorder %v206, %v575
        %vm670 = vcmp.eq.s32.totalorder %v206, %v578
        %vm671 = vcmp.eq.s32.totalorder %v206, %v581
        %vm672 = vcmp.eq.s32.totalorder %v206, %v584
        %vm673 = vcmp.eq.s32.totalorder %v206, %v587
        %vm674 = vcmp.eq.s32.totalorder %v206, %v590
        %vm675 = vcmp.eq.s32.totalorder %v206, %v593
        %vm676 = vcmp.eq.s32.totalorder %v206, %v596
        %vm677 = vcmp.eq.s32.totalorder %v206, %v599
        %vm678 = vcmp.eq.s32.totalorder %v206, %v602
        %vm679 = vcmp.eq.s32.totalorder %v206, %v605
        %vm680 = vcmp.eq.s32.totalorder %v206, %v608
        %vm681 = vcmp.eq.s32.totalorder %v206, %v611
        %vm682 = vcmp.eq.s32.totalorder %v206, %v614
        %vm683 = vcmp.eq.s32.totalorder %v206, %v617
        %vm684 = vcmp.eq.s32.totalorder %v206, %v620
        %vm685 = vcmp.eq.s32.totalorder %v206, %v623
        %vm686 = vcmp.eq.s32.totalorder %v206, %v626
        %vm687 = vmor %vm387, %vm627
        %vm688 = vmor %vm388, %vm628
        %vm689 = vmor %vm389, %vm629
        %vm690 = vmor %vm390, %vm630
        %vm691 = vmor %vm391, %vm631
        %vm692 = vmor %vm392, %vm632
        %vm693 = vmor %vm393, %vm633
        %vm694 = vmor %vm394, %vm634
        %vm695 = vmor %vm395, %vm635
        %vm696 = vmor %vm396, %vm636
        %vm697 = vmor %vm397, %vm637
        %vm698 = vmor %vm398, %vm638
        %vm699 = vmor %vm399, %vm639
        %vm700 = vmor %vm400, %vm640
        %vm701 = vmor %vm401, %vm641
        %vm702 = vmor %vm402, %vm642
        %vm703 = vmor %vm403, %vm643
        %vm704 = vmor %vm404, %vm644
        %vm705 = vmor %vm405, %vm645
        %vm706 = vmor %vm406, %vm646
        %vm707 = vmor %vm407, %vm647
        %vm708 = vmor %vm408, %vm648
        %vm709 = vmor %vm409, %vm649
        %vm710 = vmor %vm410, %vm650
        %vm711 = vmor %vm411, %vm651
        %vm712 = vmor %vm412, %vm652
        %vm713 = vmor %vm413, %vm653
        %vm714 = vmor %vm414, %vm654
        %vm715 = vmor %vm415, %vm655
        %vm716 = vmor %vm416, %vm656
        %vm717 = vmor %vm417, %vm657
        %vm718 = vmor %vm418, %vm658
        %vm719 = vmor %vm419, %vm659
        %vm720 = vmor %vm420, %vm660
        %vm721 = vmor %vm421, %vm661
        %vm722 = vmor %vm422, %vm662
        %vm723 = vmor %vm423, %vm663
        %vm724 = vmor %vm424, %vm664
        %vm725 = vmor %vm425, %vm665
        %vm726 = vmor %vm426, %vm666
        %vm727 = vmor %vm427, %vm667
        %vm728 = vmor %vm428, %vm668
        %vm729 = vmor %vm429, %vm669
        %vm730 = vmor %vm430, %vm670
        %vm731 = vmor %vm431, %vm671
        %vm732 = vmor %vm432, %vm672
        %vm733 = vmor %vm433, %vm673
        %vm734 = vmor %vm434, %vm674
        %vm735 = vmor %vm435, %vm675
        %vm736 = vmor %vm436, %vm676
        %vm737 = vmor %vm437, %vm677
        %vm738 = vmor %vm438, %vm678
        %vm739 = vmor %vm439, %vm679
        %vm740 = vmor %vm440, %vm680
        %vm741 = vmor %vm441, %vm681
        %vm742 = vmor %vm442, %vm682
        %vm743 = vmor %vm443, %vm683
        %vm744 = vmor %vm444, %vm684
        %vm745 = vmor %vm445, %vm685
        %vm746 = vmor %vm446, %vm686
        %v747 = vsel %vm687, 1, 0
        %v748 = vsel %vm688, 1, 0
        %v749 = vsel %vm689, 1, 0
        %v750 = vsel %vm690, 1, 0
        %v751 = vsel %vm691, 1, 0
        %v752 = vsel %vm692, 1, 0
        %v753 = vsel %vm693, 1, 0
        %v754 = vsel %vm694, 1, 0
        %v755 = vsel %vm695, 1, 0
        %v756 = vsel %vm696, 1, 0
        %v757 = vsel %vm697, 1, 0
        %v758 = vsel %vm698, 1, 0
        %v759 = vsel %vm699, 1, 0
        %v760 = vsel %vm700, 1, 0
        %v761 = vsel %vm701, 1, 0
        %v762 = vsel %vm702, 1, 0
        %v763 = vsel %vm703, 1, 0
        %v764 = vsel %vm704, 1, 0
        %v765 = vsel %vm705, 1, 0
        %v766 = vsel %vm706, 1, 0
        %v767 = vsel %vm707, 1, 0
        %v768 = vsel %vm708, 1, 0
        %v769 = vsel %vm709, 1, 0
        %v770 = vsel %vm710, 1, 0
        %v771 = vsel %vm711, 1, 0
        %v772 = vsel %vm712, 1, 0
        %v773 = vsel %vm713, 1, 0
        %v774 = vsel %vm714, 1, 0
        %v775 = vsel %vm715, 1, 0
        %v776 = vsel %vm716, 1, 0
        %v777 = vsel %vm717, 1, 0
        %v778 = vsel %vm718, 1, 0
        %v779 = vsel %vm719, 1, 0
        %v780 = vsel %vm720, 1, 0
        %v781 = vsel %vm721, 1, 0
        %v782 = vsel %vm722, 1, 0
        %v783 = vsel %vm723, 1, 0
        %v784 = vsel %vm724, 1, 0
        %v785 = vsel %vm725, 1, 0
        %v786 = vsel %vm726, 1, 0
        %v787 = vsel %vm727, 1, 0
        %v788 = vsel %vm728, 1, 0
        %v789 = vsel %vm729, 1, 0
        %v790 = vsel %vm730, 1, 0
        %v791 = vsel %vm731, 1, 0
        %v792 = vsel %vm732, 1, 0
        %v793 = vsel %vm733, 1, 0
        %v794 = vsel %vm734, 1, 0
        %v795 = vsel %vm735, 1, 0
        %v796 = vsel %vm736, 1, 0
        %v797 = vsel %vm737, 1, 0
        %v798 = vsel %vm738, 1, 0
        %v799 = vsel %vm739, 1, 0
        %v800 = vsel %vm740, 1, 0
        %v801 = vsel %vm741, 1, 0
        %v802 = vsel %vm742, 1, 0
        %v803 = vsel %vm743, 1, 0
        %v804 = vsel %vm744, 1, 0
        %v805 = vsel %vm745, 1, 0
        %v806 = vsel %vm746, 1, 0
        %v807 = vcvt.s32.f32 %v747
        %v808 = vcvt.s32.f32 %v748
        %v809 = vcvt.s32.f32 %v749
        %v810 = vcvt.s32.f32 %v750
        %v811 = vcvt.s32.f32 %v751
        %v812 = vcvt.s32.f32 %v752
        %v813 = vcvt.s32.f32 %v753
        %v814 = vcvt.s32.f32 %v754
        %v815 = vcvt.s32.f32 %v755
        %v816 = vcvt.s32.f32 %v756
        %v817 = vcvt.s32.f32 %v757
        %v818 = vcvt.s32.f32 %v758
        %v819 = vcvt.s32.f32 %v759
        %v820 = vcvt.s32.f32 %v760
        %v821 = vcvt.s32.f32 %v761
        %v822 = vcvt.s32.f32 %v762
        %v823 = vcvt.s32.f32 %v763
        %v824 = vcvt.s32.f32 %v764
        %v825 = vcvt.s32.f32 %v765
        %v826 = vcvt.s32.f32 %v766
        %v827 = vcvt.s32.f32 %v767
        %v828 = vcvt.s32.f32 %v768
        %v829 = vcvt.s32.f32 %v769
        %v830 = vcvt.s32.f32 %v770
        %v831 = vcvt.s32.f32 %v771
        %v832 = vcvt.s32.f32 %v772
        %v833 = vcvt.s32.f32 %v773
        %v834 = vcvt.s32.f32 %v774
        %v835 = vcvt.s32.f32 %v775
        %v836 = vcvt.s32.f32 %v776
        %v837 = vcvt.s32.f32 %v777
        %v838 = vcvt.s32.f32 %v778
        %v839 = vcvt.s32.f32 %v779
        %v840 = vcvt.s32.f32 %v780
        %v841 = vcvt.s32.f32 %v781
        %v842 = vcvt.s32.f32 %v782
        %v843 = vcvt.s32.f32 %v783
        %v844 = vcvt.s32.f32 %v784
        %v845 = vcvt.s32.f32 %v785
        %v846 = vcvt.s32.f32 %v786
        %v847 = vcvt.s32.f32 %v787
        %v848 = vcvt.s32.f32 %v788
        %v849 = vcvt.s32.f32 %v789
        %v850 = vcvt.s32.f32 %v790
        %v851 = vcvt.s32.f32 %v791
        %v852 = vcvt.s32.f32 %v792
        %v853 = vcvt.s32.f32 %v793
        %v854 = vcvt.s32.f32 %v794
        %v855 = vcvt.s32.f32 %v795
        %v856 = vcvt.s32.f32 %v796
        %v857 = vcvt.s32.f32 %v797
        %v858 = vcvt.s32.f32 %v798
        %v859 = vcvt.s32.f32 %v799
        %v860 = vcvt.s32.f32 %v800
        %v861 = vcvt.s32.f32 %v801
        %v862 = vcvt.s32.f32 %v802
        %v863 = vcvt.s32.f32 %v803
        %v864 = vcvt.s32.f32 %v804
        %v865 = vcvt.s32.f32 %v805
        %v866 = vcvt.s32.f32 %v806
        %v867 = vld [vmem:[%s1] sm:$0xff]
        %v868 = vld [vmem:[%s1 + $0x8] sm:$0xff]
        %v869 = vld [vmem:[%s1 + $0x10] sm:$0xff]
        %v870 = vld [vmem:[%s1 + $0x18] sm:$0xff]
        %v871 = vld [vmem:[%s1 + $0x20] sm:$0xff]
        %v872 = vld [vmem:[%s1 + $0x28] sm:$0xff]
        %v873 = vld [vmem:[%s1 + $0x30] sm:$0xff]
        %v874 = vld [vmem:[%s1 + $0x38] sm:$0xff]
        %v875 = vld [vmem:[%s1 + $0x40] sm:$0xff]
        %v876 = vld [vmem:[%s1 + $0x48] sm:$0xff]
        %v877 = vld [vmem:[%s1 + $0x50] sm:$0xff]
        %v878 = vld [vmem:[%s1 + $0x58] sm:$0xff]
        %v879 = vld [vmem:[%s1 + $0x60] sm:$0xff]
        %v880 = vld [vmem:[%s1 + $0x68] sm:$0xff]
        %v881 = vld [vmem:[%s1 + $0x70] sm:$0x1f]
        %vm882 = vcmask 957440
        %v884 = vsel %vm882, %v807, 0
        %v887 = vsel %vm882, %v808, 0
        %v890 = vsel %vm882, %v809, 0
        %v893 = vsel %vm882, %v810, 0
        %v896 = vsel %vm882, %v811, 0
        %v899 = vsel %vm882, %v812, 0
        %v902 = vsel %vm882, %v813, 0
        %v905 = vsel %vm882, %v814, 0
        %v908 = vsel %vm882, %v815, 0
        %v911 = vsel %vm882, %v816, 0
        %v914 = vsel %vm882, %v817, 0
        %v917 = vsel %vm882, %v818, 0
        %v920 = vsel %vm882, %v819, 0
        %v923 = vsel %vm882, %v820, 0
        %v926 = vsel %vm882, %v821, 0
        %v929 = vsel %vm882, %v822, 0
        %v932 = vsel %vm882, %v823, 0
        %v935 = vsel %vm882, %v824, 0
        %v938 = vsel %vm882, %v825, 0
        %v941 = vsel %vm882, %v826, 0
        %v944 = vsel %vm882, %v827, 0
        %v947 = vsel %vm882, %v828, 0
        %v950 = vsel %vm882, %v829, 0
        %v953 = vsel %vm882, %v830, 0
        %v956 = vsel %vm882, %v831, 0
        %v959 = vsel %vm882, %v832, 0
        %v962 = vsel %vm882, %v833, 0
        %v965 = vsel %vm882, %v834, 0
        %v968 = vsel %vm882, %v835, 0
        %v971 = vsel %vm882, %v836, 0
        %v974 = vsel %vm882, %v837, 0
        %v977 = vsel %vm882, %v838, 0
        %v980 = vsel %vm882, %v839, 0
        %v983 = vsel %vm882, %v840, 0
        %v986 = vsel %vm882, %v841, 0
        %v989 = vsel %vm882, %v842, 0
        %v992 = vsel %vm882, %v843, 0
        %v995 = vsel %vm882, %v844, 0
        %v998 = vsel %vm882, %v845, 0
        %v1001 = vsel %vm882, %v846, 0
        %v1004 = vsel %vm882, %v847, 0
        %v1007 = vsel %vm882, %v848, 0
        %v1010 = vsel %vm882, %v849, 0
        %v1013 = vsel %vm882, %v850, 0
        %v1016 = vsel %vm882, %v851, 0
        %v1019 = vsel %vm882, %v852, 0
        %v1022 = vsel %vm882, %v853, 0
        %v1025 = vsel %vm882, %v854, 0
        %v1028 = vsel %vm882, %v855, 0
        %v1031 = vsel %vm882, %v856, 0
        %v1034 = vsel %vm882, %v857, 0
        %v1037 = vsel %vm882, %v858, 0
        %v1040 = vsel %vm882, %v859, 0
        %v1043 = vsel %vm882, %v860, 0
        %v1046 = vsel %vm882, %v861, 0
        %v1049 = vsel %vm882, %v862, 0
        %v1052 = vsel %vm882, %v863, 0
        %v1055 = vsel %vm882, %v864, 0
        %v1058 = vsel %vm882, %v865, 0
        %v1061 = vsel %vm882, %v866, 0
        %vm1063 = vcmask 1044480
        %v1065 = vsel %vm1063, %v881, 0
        %1067 = vmatprep.subr.mxu0 0.0
        %1068 = vmatpush1.msra.mxu0 %v867
        %1069 = vmatprep.subr.mxu0 0.0
        %1070 = vmatpush1.msra.mxu0 %v868
        %1071 = vmatprep.subr.mxu0 0.0
        %1072 = vmatpush1.msra.mxu0 %v869
        %1073 = vmatprep.subr.mxu0 0.0
        %1074 = vmatpush1.msra.mxu0 %v870
        %1075 = vmatprep.subr.mxu0 0.0
        %1076 = vmatpush1.msra.mxu0 %v871
        %1077 = vmatprep.subr.mxu0 0.0
        %1078 = vmatpush1.msra.mxu0 %v872
        %1079 = vmatprep.subr.mxu0 0.0
        %1080 = vmatpush1.msra.mxu0 %v873
        %1081 = vmatprep.subr.mxu0 0.0
        %1082 = vmatpush1.msra.mxu0 %v874
        %1083 = vmatprep.subr.mxu0 0.0
        %1084 = vmatpush1.msra.mxu0 %v875
        %1085 = vmatprep.subr.mxu0 0.0
        %1086 = vmatpush1.msra.mxu0 %v876
        %1087 = vmatprep.subr.mxu0 0.0
        %1088 = vmatpush1.msra.mxu0 %v877
        %1089 = vmatprep.subr.mxu0 0.0
        %1090 = vmatpush1.msra.mxu0 %v878
        %1091 = vmatprep.subr.mxu0 0.0
        %1092 = vmatpush1.msra.mxu0 %v879
        %1093 = vmatprep.subr.mxu0 0.0
        %1094 = vmatpush1.msra.mxu0 %v880
        %1095 = vmatprep.subr.mxu0 0.0
        %1096 = vmatpush1.msra.mxu0 %v1065
        %1097 = vmatprep.subr.mxu0 0.0
        %1098 = vmatpush1.msra.mxu0 0.0
        %1099 = vmatprep.subr.mxu0 0.0
        %1100 = vmatpush1.msra.mxu0 0.0
        %1101 = vmatprep.subr.mxu0 0.0
        %1102 = vmatpush1.msra.mxu0 0.0
        %1103 = vmatprep.subr.mxu0 0.0
        %1104 = vmatpush1.msra.mxu0 0.0
        %1105 = vmatprep.subr.mxu0 0.0
        %1106 = vmatpush1.msra.mxu0 0.0
        %1107 = vmatprep.subr.mxu0 0.0
        %1108 = vmatpush1.msra.mxu0 0.0
        %1109 = vmatprep.subr.mxu0 0.0
        %1110 = vmatpush1.msra.mxu0 0.0
        %1111 = vmatprep.subr.mxu0 0.0
        %1112 = vmatpush1.msra.mxu0 0.0
        %1113 = vmatprep.subr.mxu0 0.0
        %1114 = vmatpush1.msra.mxu0 0.0
        %1115 = vmatprep.subr.mxu0 0.0
        %1116 = vmatpush1.msra.mxu0 0.0
        %1117 = vmatprep.subr.mxu0 0.0
        %1118 = vmatpush1.msra.mxu0 0.0
        %1119 = vmatprep.subr.mxu0 0.0
        %1120 = vmatpush1.msra.mxu0 0.0
        %1121 = vmatprep.subr.mxu0 0.0
        %1122 = vmatpush1.msra.mxu0 0.0
        %1123 = vmatprep.subr.mxu0 0.0
        %1124 = vmatpush1.msra.mxu0 0.0
        %1125 = vmatprep.subr.mxu0 0.0
        %1126 = vmatpush1.msra.mxu0 0.0
        %1127 = vmatprep.subr.mxu0 0.0
        %1128 = vmatpush1.msra.mxu0 0.0
        %1129 = vmatprep.subr.mxu0 0.0
        %1130 = vmatpush1.msra.mxu0 0.0
        %1131 = vmatprep.mubr.f32.mxu0 0.0
        %1132 = vmatmul.mubr.f32.gmra.mrb[0].mxu0 %v884
        %v1133 = vpop.f32.mrb[0].mxu0
        %v1134 = vadd.f32 0.0, %v1133
        %v1135 = vpop.f32.mrb[0].mxu0
        %1136 = vmatprep.mubr.f32.mxu0 0.0
        %1137 = vmatmul.mubr.f32.gmra.mrb[0].mxu0 %v887
        %v1138 = vpop.f32.mrb[0].mxu0
        %v1139 = vadd.f32 0.0, %v1138
        %v1140 = vpop.f32.mrb[0].mxu0
        %1141 = vmatprep.mubr.f32.mxu0 0.0
        %1142 = vmatmul.mubr.f32.gmra.mrb[0].mxu0 %v890
        %v1143 = vpop.f32.mrb[0].mxu0
        %v1144 = vadd.f32 0.0, %v1143
        %v1145 = vpop.f32.mrb[0].mxu0
        %1146 = vmatprep.mubr.f32.mxu0 0.0
        %1147 = vmatmul.mubr.f32.gmra.mrb[0].mxu0 %v893
        %v1148 = vpop.f32.mrb[0].mxu0
        %v1149 = vadd.f32 0.0, %v1148
        %v1150 = vpop.f32.mrb[0].mxu0
        %1151 = vmatprep.mubr.f32.mxu0 0.0
        %1152 = vmatmul.mubr.f32.gmra.mrb[0].mxu0 %v896
        %v1153 = vpop.f32.mrb[0].mxu0
        %v1154 = vadd.f32 0.0, %v1153
        %v1155 = vpop.f32.mrb[0].mxu0
        %1156 = vmatprep.mubr.f32.mxu0 0.0
        %1157 = vmatmul.mubr.f32.gmra.mrb[0].mxu0 %v899
        %v1158 = vpop.f32.mrb[0].mxu0
        %v1159 = vadd.f32 0.0, %v1158
        %v1160 = vpop.f32.mrb[0].mxu0
        %1161 = vmatprep.mubr.f32.mxu0 0.0
        %1162 = vmatmul.mubr.f32.gmra.mrb[0].mxu0 %v902
        %v1163 = vpop.f32.mrb[0].mxu0
        %v1164 = vadd.f32 0.0, %v1163
        %v1165 = vpop.f32.mrb[0].mxu0
        %1166 = vmatprep.mubr.f32.mxu0 0.0
        %1167 = vmatmul.mubr.f32.gmra.mrb[0].mxu0 %v905
        %v1168 = vpop.f32.mrb[0].mxu0
        %v1169 = vadd.f32 0.0, %v1168
        %v1170 = vpop.f32.mrb[0].mxu0
        %1171 = vmatprep.mubr.f32.mxu0 0.0
        %1172 = vmatmul.mubr.f32.gmra.mrb[0].mxu0 %v908
        %v1173 = vpop.f32.mrb[0].mxu0
        %v1174 = vadd.f32 0.0, %v1173
        %v1175 = vpop.f32.mrb[0].mxu0
        %1176 = vmatprep.mubr.f32.mxu0 0.0
        %1177 = vmatmul.mubr.f32.gmra.mrb[0].mxu0 %v911
        %v1178 = vpop.f32.mrb[0].mxu0
        %v1179 = vadd.f32 0.0, %v1178
        %v1180 = vpop.f32.mrb[0].mxu0
        %1181 = vmatprep.mubr.f32.mxu0 0.0
        %1182 = vmatmul.mubr.f32.gmra.mrb[0].mxu0 %v914
        %v1183 = vpop.f32.mrb[0].mxu0
        %v1184 = vadd.f32 0.0, %v1183
        %v1185 = vpop.f32.mrb[0].mxu0
        %1186 = vmatprep.mubr.f32.mxu0 0.0
        %1187 = vmatmul.mubr.f32.gmra.mrb[0].mxu0 %v917
        %v1188 = vpop.f32.mrb[0].mxu0
        %v1189 = vadd.f32 0.0, %v1188
        %v1190 = vpop.f32.mrb[0].mxu0
        %1191 = vmatprep.mubr.f32.mxu0 0.0
        %1192 = vmatmul.mubr.f32.gmra.mrb[0].mxu0 %v920
        %v1193 = vpop.f32.mrb[0].mxu0
        %v1194 = vadd.f32 0.0, %v1193
        %v1195 = vpop.f32.mrb[0].mxu0
        %1196 = vmatprep.mubr.f32.mxu0 0.0
        %1197 = vmatmul.mubr.f32.gmra.mrb[0].mxu0 %v923
        %v1198 = vpop.f32.mrb[0].mxu0
        %v1199 = vadd.f32 0.0, %v1198
        %v1200 = vpop.f32.mrb[0].mxu0
        %1201 = vmatprep.mubr.f32.mxu0 0.0
        %1202 = vmatmul.mubr.f32.gmra.mrb[0].mxu0 %v926
        %v1203 = vpop.f32.mrb[0].mxu0
        %v1204 = vadd.f32 0.0, %v1203
        %v1205 = vpop.f32.mrb[0].mxu0
        %1206 = vmatprep.mubr.f32.mxu0 0.0
        %1207 = vmatmul.mubr.f32.gmra.mrb[0].mxu0 %v929
        %v1208 = vpop.f32.mrb[0].mxu0
        %v1209 = vadd.f32 0.0, %v1208
        %v1210 = vpop.f32.mrb[0].mxu0
        %1211 = vmatprep.mubr.f32.mxu0 0.0
        %1212 = vmatmul.mubr.f32.gmra.mrb[0].mxu0 %v932
        %v1213 = vpop.f32.mrb[0].mxu0
        %v1214 = vadd.f32 0.0, %v1213
        %v1215 = vpop.f32.mrb[0].mxu0
        %1216 = vmatprep.mubr.f32.mxu0 0.0
        %1217 = vmatmul.mubr.f32.gmra.mrb[0].mxu0 %v935
        %v1218 = vpop.f32.mrb[0].mxu0
        %v1219 = vadd.f32 0.0, %v1218
        %v1220 = vpop.f32.mrb[0].mxu0
        %1221 = vmatprep.mubr.f32.mxu0 0.0
        %1222 = vmatmul.mubr.f32.gmra.mrb[0].mxu0 %v938
        %v1223 = vpop.f32.mrb[0].mxu0
        %v1224 = vadd.f32 0.0, %v1223
        %v1225 = vpop.f32.mrb[0].mxu0
        %1226 = vmatprep.mubr.f32.mxu0 0.0
        %1227 = vmatmul.mubr.f32.gmra.mrb[0].mxu0 %v941
        %v1228 = vpop.f32.mrb[0].mxu0
        %v1229 = vadd.f32 0.0, %v1228
        %v1230 = vpop.f32.mrb[0].mxu0
        %1231 = vmatprep.mubr.f32.mxu0 0.0
        %1232 = vmatmul.mubr.f32.gmra.mrb[0].mxu0 %v944
        %v1233 = vpop.f32.mrb[0].mxu0
        %v1234 = vadd.f32 0.0, %v1233
        %v1235 = vpop.f32.mrb[0].mxu0
        %1236 = vmatprep.mubr.f32.mxu0 0.0
        %1237 = vmatmul.mubr.f32.gmra.mrb[0].mxu0 %v947
        %v1238 = vpop.f32.mrb[0].mxu0
        %v1239 = vadd.f32 0.0, %v1238
        %v1240 = vpop.f32.mrb[0].mxu0
        %1241 = vmatprep.mubr.f32.mxu0 0.0
        %1242 = vmatmul.mubr.f32.gmra.mrb[0].mxu0 %v950
        %v1243 = vpop.f32.mrb[0].mxu0
        %v1244 = vadd.f32 0.0, %v1243
        %v1245 = vpop.f32.mrb[0].mxu0
        %1246 = vmatprep.mubr.f32.mxu0 0.0
        %1247 = vmatmul.mubr.f32.gmra.mrb[0].mxu0 %v953
        %v1248 = vpop.f32.mrb[0].mxu0
        %v1249 = vadd.f32 0.0, %v1248
        %v1250 = vpop.f32.mrb[0].mxu0
        %1251 = vmatprep.mubr.f32.mxu0 0.0
        %1252 = vmatmul.mubr.f32.gmra.mrb[0].mxu0 %v956
        %v1253 = vpop.f32.mrb[0].mxu0
        %v1254 = vadd.f32 0.0, %v1253
        %v1255 = vpop.f32.mrb[0].mxu0
        %1256 = vmatprep.mubr.f32.mxu0 0.0
        %1257 = vmatmul.mubr.f32.gmra.mrb[0].mxu0 %v959
        %v1258 = vpop.f32.mrb[0].mxu0
        %v1259 = vadd.f32 0.0, %v1258
        %v1260 = vpop.f32.mrb[0].mxu0
        %1261 = vmatprep.mubr.f32.mxu0 0.0
        %1262 = vmatmul.mubr.f32.gmra.mrb[0].mxu0 %v962
        %v1263 = vpop.f32.mrb[0].mxu0
        %v1264 = vadd.f32 0.0, %v1263
        %v1265 = vpop.f32.mrb[0].mxu0
        %1266 = vmatprep.mubr.f32.mxu0 0.0
        %1267 = vmatmul.mubr.f32.gmra.mrb[0].mxu0 %v965
        %v1268 = vpop.f32.mrb[0].mxu0
        %v1269 = vadd.f32 0.0, %v1268
        %v1270 = vpop.f32.mrb[0].mxu0
        %1271 = vmatprep.mubr.f32.mxu0 0.0
        %1272 = vmatmul.mubr.f32.gmra.mrb[0].mxu0 %v968
        %v1273 = vpop.f32.mrb[0].mxu0
        %v1274 = vadd.f32 0.0, %v1273
        %v1275 = vpop.f32.mrb[0].mxu0
        %1276 = vmatprep.mubr.f32.mxu0 0.0
        %1277 = vmatmul.mubr.f32.gmra.mrb[0].mxu0 %v971
        %v1278 = vpop.f32.mrb[0].mxu0
        %v1279 = vadd.f32 0.0, %v1278
        %v1280 = vpop.f32.mrb[0].mxu0
        %1281 = vmatprep.mubr.f32.mxu0 0.0
        %1282 = vmatmul.mubr.f32.gmra.mrb[0].mxu0 %v974
        %v1283 = vpop.f32.mrb[0].mxu0
        %v1284 = vadd.f32 0.0, %v1283
        %v1285 = vpop.f32.mrb[0].mxu0
        %1286 = vmatprep.mubr.f32.mxu0 0.0
        %1287 = vmatmul.mubr.f32.gmra.mrb[0].mxu0 %v977
        %v1288 = vpop.f32.mrb[0].mxu0
        %v1289 = vadd.f32 0.0, %v1288
        %v1290 = vpop.f32.mrb[0].mxu0
        %1291 = vmatprep.mubr.f32.mxu0 0.0
        %1292 = vmatmul.mubr.f32.gmra.mrb[0].mxu0 %v980
        %v1293 = vpop.f32.mrb[0].mxu0
        %v1294 = vadd.f32 0.0, %v1293
        %v1295 = vpop.f32.mrb[0].mxu0
        %1296 = vmatprep.mubr.f32.mxu0 0.0
        %1297 = vmatmul.mubr.f32.gmra.mrb[0].mxu0 %v983
        %v1298 = vpop.f32.mrb[0].mxu0
        %v1299 = vadd.f32 0.0, %v1298
        %v1300 = vpop.f32.mrb[0].mxu0
        %1301 = vmatprep.mubr.f32.mxu0 0.0
        %1302 = vmatmul.mubr.f32.gmra.mrb[0].mxu0 %v986
        %v1303 = vpop.f32.mrb[0].mxu0
        %v1304 = vadd.f32 0.0, %v1303
        %v1305 = vpop.f32.mrb[0].mxu0
        %1306 = vmatprep.mubr.f32.mxu0 0.0
        %1307 = vmatmul.mubr.f32.gmra.mrb[0].mxu0 %v989
        %v1308 = vpop.f32.mrb[0].mxu0
        %v1309 = vadd.f32 0.0, %v1308
        %v1310 = vpop.f32.mrb[0].mxu0
        %1311 = vmatprep.mubr.f32.mxu0 0.0
        %1312 = vmatmul.mubr.f32.gmra.mrb[0].mxu0 %v992
        %v1313 = vpop.f32.mrb[0].mxu0
        %v1314 = vadd.f32 0.0, %v1313
        %v1315 = vpop.f32.mrb[0].mxu0
        %1316 = vmatprep.mubr.f32.mxu0 0.0
        %1317 = vmatmul.mubr.f32.gmra.mrb[0].mxu0 %v995
        %v1318 = vpop.f32.mrb[0].mxu0
        %v1319 = vadd.f32 0.0, %v1318
        %v1320 = vpop.f32.mrb[0].mxu0
        %1321 = vmatprep.mubr.f32.mxu0 0.0
        %1322 = vmatmul.mubr.f32.gmra.mrb[0].mxu0 %v998
        %v1323 = vpop.f32.mrb[0].mxu0
        %v1324 = vadd.f32 0.0, %v1323
        %v1325 = vpop.f32.mrb[0].mxu0
        %1326 = vmatprep.mubr.f32.mxu0 0.0
        %1327 = vmatmul.mubr.f32.gmra.mrb[0].mxu0 %v1001
        %v1328 = vpop.f32.mrb[0].mxu0
        %v1329 = vadd.f32 0.0, %v1328
        %v1330 = vpop.f32.mrb[0].mxu0
        %1331 = vmatprep.mubr.f32.mxu0 0.0
        %1332 = vmatmul.mubr.f32.gmra.mrb[0].mxu0 %v1004
        %v1333 = vpop.f32.mrb[0].mxu0
        %v1334 = vadd.f32 0.0, %v1333
        %v1335 = vpop.f32.mrb[0].mxu0
        %1336 = vmatprep.mubr.f32.mxu0 0.0
        %1337 = vmatmul.mubr.f32.gmra.mrb[0].mxu0 %v1007
        %v1338 = vpop.f32.mrb[0].mxu0
        %v1339 = vadd.f32 0.0, %v1338
        %v1340 = vpop.f32.mrb[0].mxu0
        %1341 = vmatprep.mubr.f32.mxu0 0.0
        %1342 = vmatmul.mubr.f32.gmra.mrb[0].mxu0 %v1010
        %v1343 = vpop.f32.mrb[0].mxu0
        %v1344 = vadd.f32 0.0, %v1343
        %v1345 = vpop.f32.mrb[0].mxu0
        %1346 = vmatprep.mubr.f32.mxu0 0.0
        %1347 = vmatmul.mubr.f32.gmra.mrb[0].mxu0 %v1013
        %v1348 = vpop.f32.mrb[0].mxu0
        %v1349 = vadd.f32 0.0, %v1348
        %v1350 = vpop.f32.mrb[0].mxu0
        %1351 = vmatprep.mubr.f32.mxu0 0.0
        %1352 = vmatmul.mubr.f32.gmra.mrb[0].mxu0 %v1016
        %v1353 = vpop.f32.mrb[0].mxu0
        %v1354 = vadd.f32 0.0, %v1353
        %v1355 = vpop.f32.mrb[0].mxu0
        %1356 = vmatprep.mubr.f32.mxu0 0.0
        %1357 = vmatmul.mubr.f32.gmra.mrb[0].mxu0 %v1019
        %v1358 = vpop.f32.mrb[0].mxu0
        %v1359 = vadd.f32 0.0, %v1358
        %v1360 = vpop.f32.mrb[0].mxu0
        %1361 = vmatprep.mubr.f32.mxu0 0.0
        %1362 = vmatmul.mubr.f32.gmra.mrb[0].mxu0 %v1022
        %v1363 = vpop.f32.mrb[0].mxu0
        %v1364 = vadd.f32 0.0, %v1363
        %v1365 = vpop.f32.mrb[0].mxu0
        %1366 = vmatprep.mubr.f32.mxu0 0.0
        %1367 = vmatmul.mubr.f32.gmra.mrb[0].mxu0 %v1025
        %v1368 = vpop.f32.mrb[0].mxu0
        %v1369 = vadd.f32 0.0, %v1368
        %v1370 = vpop.f32.mrb[0].mxu0
        %1371 = vmatprep.mubr.f32.mxu0 0.0
        %1372 = vmatmul.mubr.f32.gmra.mrb[0].mxu0 %v1028
        %v1373 = vpop.f32.mrb[0].mxu0
        %v1374 = vadd.f32 0.0, %v1373
        %v1375 = vpop.f32.mrb[0].mxu0
        %1376 = vmatprep.mubr.f32.mxu0 0.0
        %1377 = vmatmul.mubr.f32.gmra.mrb[0].mxu0 %v1031
        %v1378 = vpop.f32.mrb[0].mxu0
        %v1379 = vadd.f32 0.0, %v1378
        %v1380 = vpop.f32.mrb[0].mxu0
        %1381 = vmatprep.mubr.f32.mxu0 0.0
        %1382 = vmatmul.mubr.f32.gmra.mrb[0].mxu0 %v1034
        %v1383 = vpop.f32.mrb[0].mxu0
        %v1384 = vadd.f32 0.0, %v1383
        %v1385 = vpop.f32.mrb[0].mxu0
        %1386 = vmatprep.mubr.f32.mxu0 0.0
        %1387 = vmatmul.mubr.f32.gmra.mrb[0].mxu0 %v1037
        %v1388 = vpop.f32.mrb[0].mxu0
        %v1389 = vadd.f32 0.0, %v1388
        %v1390 = vpop.f32.mrb[0].mxu0
        %1391 = vmatprep.mubr.f32.mxu0 0.0
        %1392 = vmatmul.mubr.f32.gmra.mrb[0].mxu0 %v1040
        %v1393 = vpop.f32.mrb[0].mxu0
        %v1394 = vadd.f32 0.0, %v1393
        %v1395 = vpop.f32.mrb[0].mxu0
        %1396 = vmatprep.mubr.f32.mxu0 0.0
        %1397 = vmatmul.mubr.f32.gmra.mrb[0].mxu0 %v1043
        %v1398 = vpop.f32.mrb[0].mxu0
        %v1399 = vadd.f32 0.0, %v1398
        %v1400 = vpop.f32.mrb[0].mxu0
        %1401 = vmatprep.mubr.f32.mxu0 0.0
        %1402 = vmatmul.mubr.f32.gmra.mrb[0].mxu0 %v1046
        %v1403 = vpop.f32.mrb[0].mxu0
        %v1404 = vadd.f32 0.0, %v1403
        %v1405 = vpop.f32.mrb[0].mxu0
        %1406 = vmatprep.mubr.f32.mxu0 0.0
        %1407 = vmatmul.mubr.f32.gmra.mrb[0].mxu0 %v1049
        %v1408 = vpop.f32.mrb[0].mxu0
        %v1409 = vadd.f32 0.0, %v1408
        %v1410 = vpop.f32.mrb[0].mxu0
        %1411 = vmatprep.mubr.f32.mxu0 0.0
        %1412 = vmatmul.mubr.f32.gmra.mrb[0].mxu0 %v1052
        %v1413 = vpop.f32.mrb[0].mxu0
        %v1414 = vadd.f32 0.0, %v1413
        %v1415 = vpop.f32.mrb[0].mxu0
        %1416 = vmatprep.mubr.f32.mxu0 0.0
        %1417 = vmatmul.mubr.f32.gmra.mrb[0].mxu0 %v1055
        %v1418 = vpop.f32.mrb[0].mxu0
        %v1419 = vadd.f32 0.0, %v1418
        %v1420 = vpop.f32.mrb[0].mxu0
        %1421 = vmatprep.mubr.f32.mxu0 0.0
        %1422 = vmatmul.mubr.f32.gmra.mrb[0].mxu0 %v1058
        %v1423 = vpop.f32.mrb[0].mxu0
        %v1424 = vadd.f32 0.0, %v1423
        %v1425 = vpop.f32.mrb[0].mxu0
        %1426 = vmatprep.mubr.f32.mxu0 0.0
        %1427 = vmatmul.mubr.f32.gmra.mrb[0].mxu0 %v1061
        %v1428 = vpop.f32.mrb[0].mxu0
        %v1429 = vadd.f32 0.0, %v1428
        %v1430 = vpop.f32.mrb[0].mxu0
        %1431 = vdwg.mxu0
        %1432 = vst [vmem:[%s137] sm:$0xff] %v1134
        %1433 = vst [vmem:[%s137 + $0x8] sm:$0xff] %v1139
        %1434 = vst [vmem:[%s137 + $0x10] sm:$0xff] %v1144
        %1435 = vst [vmem:[%s137 + $0x18] sm:$0xff] %v1149
        %1436 = vst [vmem:[%s137 + $0x20] sm:$0xff] %v1154
        %1437 = vst [vmem:[%s137 + $0x28] sm:$0xff] %v1159
        %1438 = vst [vmem:[%s137 + $0x30] sm:$0xff] %v1164
        %1439 = vst [vmem:[%s137 + $0x38] sm:$0xff] %v1169
        %1440 = vst [vmem:[%s137 + $0x40] sm:$0xff] %v1174
        %1441 = vst [vmem:[%s137 + $0x48] sm:$0xff] %v1179
        %1442 = vst [vmem:[%s137 + $0x50] sm:$0xff] %v1184
        %1443 = vst [vmem:[%s137 + $0x58] sm:$0xff] %v1189
        %1444 = vst [vmem:[%s137 + $0x60] sm:$0xff] %v1194
        %1445 = vst [vmem:[%s137 + $0x68] sm:$0xff] %v1199
        %1446 = vst [vmem:[%s137 + $0x70] sm:$0xff] %v1204
        %1447 = vst [vmem:[%s137 + $0x78] sm:$0xff] %v1209
        %1448 = vst [vmem:[%s137 + $0x80] sm:$0xff] %v1214
        %1449 = vst [vmem:[%s137 + $0x88] sm:$0xff] %v1219
        %1450 = vst [vmem:[%s137 + $0x90] sm:$0xff] %v1224
        %1451 = vst [vmem:[%s137 + $0x98] sm:$0xff] %v1229
        %1452 = vst [vmem:[%s137 + $0xa0] sm:$0xff] %v1234
        %1453 = vst [vmem:[%s137 + $0xa8] sm:$0xff] %v1239
        %1454 = vst [vmem:[%s137 + $0xb0] sm:$0xff] %v1244
        %1455 = vst [vmem:[%s137 + $0xb8] sm:$0xff] %v1249
        %1456 = vst [vmem:[%s137 + $0xc0] sm:$0xff] %v1254
        %1457 = vst [vmem:[%s137 + $0xc8] sm:$0xff] %v1259
        %1458 = vst [vmem:[%s137 + $0xd0] sm:$0xff] %v1264
        %1459 = vst [vmem:[%s137 + $0xd8] sm:$0xff] %v1269
        %1460 = vst [vmem:[%s137 + $0xe0] sm:$0xff] %v1274
        %1461 = vst [vmem:[%s137 + $0xe8] sm:$0xff] %v1279
        %1462 = vst [vmem:[%s137 + $0xf0] sm:$0xff] %v1284
        %1463 = vst [vmem:[%s137 + $0xf8] sm:$0xff] %v1289
        %1464 = vst [vmem:[%s137 + $0x100] sm:$0xff] %v1294
        %1465 = vst [vmem:[%s137 + $0x108] sm:$0xff] %v1299
        %1466 = vst [vmem:[%s137 + $0x110] sm:$0xff] %v1304
        %1467 = vst [vmem:[%s137 + $0x118] sm:$0xff] %v1309
        %1468 = vst [vmem:[%s137 + $0x120] sm:$0xff] %v1314
        %1469 = vst [vmem:[%s137 + $0x128] sm:$0xff] %v1319
        %1470 = vst [vmem:[%s137 + $0x130] sm:$0xff] %v1324
        %1471 = vst [vmem:[%s137 + $0x138] sm:$0xff] %v1329
        %1472 = vst [vmem:[%s137 + $0x140] sm:$0xff] %v1334
        %1473 = vst [vmem:[%s137 + $0x148] sm:$0xff] %v1339
        %1474 = vst [vmem:[%s137 + $0x150] sm:$0xff] %v1344
        %1475 = vst [vmem:[%s137 + $0x158] sm:$0xff] %v1349
        %1476 = vst [vmem:[%s137 + $0x160] sm:$0xff] %v1354
        %1477 = vst [vmem:[%s137 + $0x168] sm:$0xff] %v1359
        %1478 = vst [vmem:[%s137 + $0x170] sm:$0xff] %v1364
        %1479 = vst [vmem:[%s137 + $0x178] sm:$0xff] %v1369
        %1480 = vst [vmem:[%s137 + $0x180] sm:$0xff] %v1374
        %1481 = vst [vmem:[%s137 + $0x188] sm:$0xff] %v1379
        %1482 = vst [vmem:[%s137 + $0x190] sm:$0xff] %v1384
        %1483 = vst [vmem:[%s137 + $0x198] sm:$0xff] %v1389
        %1484 = vst [vmem:[%s137 + $0x1a0] sm:$0xff] %v1394
        %1485 = vst [vmem:[%s137 + $0x1a8] sm:$0xff] %v1399
        %1486 = vst [vmem:[%s137 + $0x1b0] sm:$0xff] %v1404
        %1487 = vst [vmem:[%s137 + $0x1b8] sm:$0xff] %v1409
        %1488 = vst [vmem:[%s137 + $0x1c0] sm:$0xff] %v1414
        %1489 = vst [vmem:[%s137 + $0x1c8] sm:$0xff] %v1419
        %1490 = vst [vmem:[%s137 + $0x1d0] sm:$0xff] %v1424
        %1491 = vst [vmem:[%s137 + $0x1d8] sm:$0xff] %v1429
        %s1492 = sand.u32 %s71, 1
        %s1493 = scalar_lea.sflag [#allocation3], %s1492
        %s1494 = sand.u32 %s71, 1
        %s1495 = smul.addr %s1494, 480
        %s1496 = scalar_lea.vmem [#allocation2], %s1495
        // Predicated region
        $region29: #{tpu_custom_call.1} parent=27 // pred_check
          %p1497 = pneg %p81
        $region30: #{tpu_custom_call.1} parent=27 // pred_check_branch
          %1499 = sbr.rel (%p1497) target = $region32
        $region31: #{tpu_custom_call.1} parent=27 // pred_region
          %s1500 = smul.u32 60, %s16
          %s1502 = ssub.s32 7680, 7680
          %1503 = vsyncadd %s1493, %s1502
          %s1504 = smul.addr %s1500, 128
          %s1505 = scalar_lea.hbm %s2, %s1504
          %s1506 = sshll.u32 %s1496, 4
          %s1507 = int_to_ptr.vmem [resolvable:$true] %s1506
          %1512 = dma.vmem_to_hbm [thread:$0]  %s1507, 7680, %s1505, %s1493, 128, 128, 8
        $region32: #{tpu_custom_call.1} parent=27 // pred_fallthru
          _
      $region28: #{tpu_custom_call.1} parent=5 // pred_fallthru
        _
      %p1513 = scmp.le.s32.totalorder 2, %s11
      // Predicated region
      $region33: #{tpu_custom_call.1} parent=5 // pred_check
        %p1514 = pneg %p1513
      $region34: #{tpu_custom_call.1} parent=5 // pred_check_branch
        %1516 = sbr.rel (%p1514) target = $region36
      $region35: #{tpu_custom_call.1} parent=5 // pred_region
        %s1517 = ssub.s32 %s11, 2
        // Predicated region
        $region37: #{tpu_custom_call.1} parent=35 // pred_check
          %p1518 = pneg %p87
        $region38: #{tpu_custom_call.1} parent=35 // pred_check_branch
          %1520 = sbr.rel (%p1518) target = $region40
        $region39: #{tpu_custom_call.1} parent=35 // pred_region
          %s1521 = sand.u32 %s72, 1
          %s1522 = scalar_lea.sflag [#allocation3], %s1521
          %s1523 = sand.u32 %s72, 1
          %s1524 = smul.addr %s1523, 480
          %s1525 = scalar_lea.vmem [#allocation2], %s1524
          %1526 = dma.done %s1522, 7680
        $region40: #{tpu_custom_call.1} parent=35 // pred_fallthru
          _
      $region36: #{tpu_custom_call.1} parent=5 // pred_fallthru
        _
    $region6: #{tpu_custom_call.1} parent=1 // loop_footer
      %s15 = sadd.s32 1, %s11
    $region7: #{tpu_custom_call.1} parent=1 // loop_footer_branch
      %10 = sbr.rel target = $region3
    $region8: #{tpu_custom_call.1} parent=1 // loop_exit
      _
    %1527 = vsyncpa [#allocation3], 1
    %s1528 = scalar_lea.sflag [#allocation3], 1
    %1529 = vsyncpa %s1528, 1

</llo_original>
